<compile_context>
chip_gen: v7x
topology: tpu7x:2x2x1
jax: 0.10.0
libtpu: 0.0.40
codegen_flags: <defaults>
</compile_context>

<pallas_src>
import math
from typing import Any, NamedTuple

import jax
import jax.numpy as jnp
from jax import lax
from jax.experimental import pallas as pl
from jax.experimental.pallas import tpu as pltpu

_INV_SQRT2 = 1.0 / math.sqrt(2.0)


def _round_up(x, m):
    return (x + m - 1) // m * m


def _cdiv(a, b):
    return -(-a // b)


def _pad2(a, rows, cols):
    pr, pc = rows - a.shape[0], cols - a.shape[1]
    if pr or pc:
        a = jnp.pad(a, ((0, pr), (0, pc)))
    return a


def _usable_vmem_bytes():
    """Generation-aware VMEM budget: v5e/v6e have 128 MiB physical, v7x only 64 MiB."""
    cap = 64 << 20  # safe default (v7x-sized) if the query is unavailable
    try:
        info = pltpu.get_tpu_info()
        cap = int(getattr(info, "vmem_capacity_bytes", cap)) or cap
    except Exception:
        pass
    # leave headroom for compiler temps / internal scratch
    return min(int(cap * 0.8), cap - (8 << 20))


def _vmem_estimate(tm, th, Wp, cb, ob):
    """Rough VMEM footprint of one grid step with default double-buffering."""
    return (2 * tm * Wp * cb                 # x tile (double-buffered)
            + 2 * (Wp * th + th * Wp) * cb   # w_fc / w_proj chunks (double-buffered)
            + 2 * (th + Wp) * 4              # f32 bias chunks
            + 2 * tm * Wp * ob               # output tile (double-buffered)
            + tm * Wp * 4                    # resident f32 accumulator scratch
            + 2 * tm * th * 4)               # f32 hidden intermediate + headroom


class MLPPrepared(NamedTuple):
    w_fc: Any       # (Wp, Hp) compute_dtype
    b_fc: Any       # (1, Hp)  f32
    w_proj: Any     # (Hp, Wp) compute_dtype
    b_proj: Any     # (1, Wp)  f32
    W: int
    H: int
    Wp: int
    Hp: int
    th: int
    compute_dtype: Any


def prepare_mlp_params(w_fc, b_fc, w_proj, b_proj, *, tile_h=512, align=256,
                       compute_dtype=jnp.bfloat16):
    """Cast + zero-pad the weights ONCE (hoisted out of the per-forward path).

    w_fc: (W, 4W), b_fc: (4W,), w_proj: (4W, W), b_proj: (W,)  — (in, out) layout.
    Padding is 256-aligned so both matmuls fully fill the 256x256 MXU (v6e/v7x).
    Zero padding is exact: gelu(0) == 0 and zero weight rows/cols contribute nothing."""
    W, H = w_fc.shape
    assert w_proj.shape == (H, W) and b_fc.shape == (H,) and b_proj.shape == (W,)

    cb = jnp.dtype(compute_dtype).itemsize
    budget = _usable_vmem_bytes()

    Wp = _round_up(W, align)
    th = min(_round_up(tile_h, align), _round_up(H, align))
    # keep the (double-buffered) weight chunks within ~1/3 of the VMEM budget
    while th > align and 4 * Wp * th * cb > budget // 3:
        th = _round_up(th // 2, align)
    Hp = _round_up(H, th)

    wfc_p = _pad2(w_fc.astype(compute_dtype), Wp, Hp)
    bfc_p = _pad2(b_fc.astype(jnp.float32).reshape(1, H), 1, Hp)
    wproj_p = _pad2(w_proj.astype(compute_dtype), Hp, Wp)
    bproj_p = _pad2(b_proj.astype(jnp.float32).reshape(1, W), 1, Wp)
    return MLPPrepared(wfc_p, bfc_p, wproj_p, bproj_p, W, H, Wp, Hp, th, compute_dtype)


def _make_mlp_kernel(approximate_gelu):
    def kernel(x_ref, wfc_ref, bfc_ref, wproj_ref, bproj_ref, o_ref, acc_ref):
        # x_ref:     (tm, Wp)   bf16        wfc_ref:   (Wp, th)  bf16
        # bfc_ref:   (1, th)    f32         wproj_ref: (th, Wp)  bf16
        # bproj_ref: (1, Wp)    f32         o_ref:     (tm, Wp)  out dtype
        # acc_ref:   (tm, Wp)   f32 scratch accumulator (resident across the H axis)
        hk = pl.program_id(1)

        @pl.when(hk == 0)
        def _init():
            acc_ref[...] = jnp.zeros_like(acc_ref)

        # c_fc chunk: (tm, Wp) @ (Wp, th) -> f32 (tm, th), + bias (f32)
        h = jnp.dot(x_ref[...], wfc_ref[...], preferred_element_type=jnp.float32)
        h = h + bfc_ref[...]

        if approximate_gelu:
            # tanh-GELU: transcendental goes to the EUP (free VLIW slot vs. VPU erf poly)
            h = jax.nn.gelu(h, approximate=True)
        else:
            # exact erf-GELU, matching torch.nn.GELU() default
            h = 0.5 * h * (1.0 + lax.erf(h * _INV_SQRT2))

        # c_proj chunk: accumulate (tm, th) @ (th, Wp) into the f32 accumulator
        acc_ref[...] += jnp.dot(h.astype(wproj_ref.dtype), wproj_ref[...],
                                preferred_element_type=jnp.float32)

        @pl.when(hk == pl.num_programs(1) - 1)
        def _finalize():
            o_ref[...] = (acc_ref[...] + bproj_ref[...]).astype(o_ref.dtype)

    return kernel


def mlp_pallas(x, prep: MLPPrepared, *, tile_m=512, approximate_gelu=False):
    """x: [..., W] with W == prep.W.  Returns gelu-MLP(x) in x.dtype."""
    orig_shape = x.shape
    out_dtype = x.dtype
    W, Wp, Hp, th = prep.W, prep.Wp, prep.Hp, prep.th
    assert orig_shape[-1] == W
    compute_dtype = prep.compute_dtype
    cb = jnp.dtype(compute_dtype).itemsize
    ob = jnp.dtype(out_dtype).itemsize

    x2d = x.reshape(-1, W)
    M = x2d.shape[0]
    budget = _usable_vmem_bytes()

    # --- M tiling -----------------------------------------------------------
    # bf16 packs 16 rows per vreg -> keep tm a multiple of 16.
    m_rounded = _round_up(M, 16)
    tm = min(_round_up(tile_m, 16), m_rounded)
    n_m = _cdiv(m_rounded, tm)
    # Guarantee >= 2 M tiles when M is big enough so the "parallel" axis can shard
    # across the two TensorCores of a v7x megacore (near-free on 1-TC chips).
    if n_m == 1 and m_rounded >= 256:
        n_m = 2
    tm = _round_up(_cdiv(m_rounded, n_m), 16)
    # Shrink tm until the tile set fits this generation's VMEM budget.
    while tm > 64 and _vmem_estimate(tm, th, Wp, cb, ob) > budget:
        tm = max(64, _round_up(tm // 2, 16))
    Mp = _round_up(M, tm)

    x_p = _pad2(x2d.astype(compute_dtype), Mp, Wp)

    grid = (Mp // tm, Hp // th)

    est = _vmem_estimate(tm, th, Wp, cb, ob)
    vmem_limit = int(min(max(est * 3 // 2 + (4 << 20), 32 << 20), budget))

    cost = pl.CostEstimate(
        flops=4 * Mp * Wp * Hp,                       # two matmuls, 2*M*N*K each
        transcendentals=Mp * Hp,                      # GELU nonlinearity
        bytes_accessed=(Mp * Wp * (cb + ob)           # activations in/out
                        + grid[0] * 2 * Wp * Hp * cb),  # weights re-streamed per M tile
    )

    out = pl.pallas_call(
        _make_mlp_kernel(approximate_gelu),
        out_shape=jax.ShapeDtypeStruct((Mp, Wp), out_dtype),
        grid_spec=pltpu.PrefetchScalarGridSpec(
            num_scalar_prefetch=0,
            grid=grid,
            in_specs=[
                pl.BlockSpec((tm, Wp), lambda i, h: (i, 0)),   # x rows (resident over h)
                pl.BlockSpec((Wp, th), lambda i, h: (0, h)),   # w_fc H-chunk
                pl.BlockSpec((1, th), lambda i, h: (0, h)),    # b_fc H-chunk
                pl.BlockSpec((th, Wp), lambda i, h: (h, 0)),   # w_proj H-chunk
                pl.BlockSpec((1, Wp), lambda i, h: (0, 0)),    # b_proj (resident)
            ],
            out_specs=pl.BlockSpec((tm, Wp), lambda i, h: (i, 0)),
            scratch_shapes=[pltpu.VMEM((tm, Wp), jnp.float32)],
        ),
        compiler_params=pltpu.CompilerParams(
            dimension_semantics=("parallel", "arbitrary"),
            vmem_limit_bytes=vmem_limit,
        ),
        cost_estimate=cost,
    )(x_p, prep.w_fc, prep.b_fc, prep.w_proj, prep.b_proj)

    return out[:M, :W].reshape(orig_shape)


def mlp_reference(x, w_fc, b_fc, w_proj, b_proj, compute_dtype=jnp.bfloat16):
    """Pure-JAX reference with the same bf16-matmul / f32-accumulate recipe."""
    cd = compute_dtype
    h = jnp.dot(x.astype(cd), w_fc.astype(cd),
                preferred_element_type=jnp.float32) + b_fc.astype(jnp.float32)
    h = 0.5 * h * (1.0 + lax.erf(h * _INV_SQRT2))
    out = jnp.dot(h.astype(cd), w_proj.astype(cd),
                  preferred_element_type=jnp.float32) + b_proj.astype(jnp.float32)
    return out.astype(x.dtype)


def init_mlp_params(key, width, init_scale, dtype=jnp.float32):
    """Mirrors init_linear: weight ~ N(0, init_scale), bias = 0.
    Returned weights are already transposed to (in, out) layout."""
    k1, k2 = jax.random.split(key)
    # PyTorch Linear weight shapes: c_fc (4W, W), c_proj (W, 4W); transpose -> (in, out)
    w_fc = (init_scale * jax.random.normal(k1, (width * 4, width), dtype=dtype)).T
    b_fc = jnp.zeros((width * 4,), dtype=dtype)
    w_proj = (init_scale * jax.random.normal(k2, (width, width * 4), dtype=dtype)).T
    b_proj = jnp.zeros((width,), dtype=dtype)
    return w_fc, b_fc, w_proj, b_proj


if __name__ == "__main__":
    init_scale = 0.02

    # --- Test 1: small module-shaped input (batch=2, seq=8, width=32) ---
    k_x, k_p = jax.random.split(jax.random.PRNGKey(0))
    batch, seq, width = 2, 8, 32
    x = jax.random.normal(k_x, (batch, seq, width), dtype=jnp.float32)
    params = init_mlp_params(k_p, width, init_scale, jnp.float32)
    prep = prepare_mlp_params(*params)          # one-time weight cast + pad

    out = jax.block_until_ready(mlp_pallas(x, prep))
    out_ref = mlp_reference(x, *params)
    assert out.shape == (batch, seq, width)
    assert bool(jnp.allclose(out, out_ref, atol=2e-4, rtol=1e-3)), "test1 mismatch"

    # --- Test 2: exercises M tiling + padding and the H-chunk reduction axis ---
    k_x2, k_p2 = jax.random.split(jax.random.PRNGKey(1))
    batch2, seq2, width2 = 2, 120, 96     # M=240 -> 2 M tiles; H=384 -> Hp=512, 2 H-chunks
    x2 = jax.random.normal(k_x2, (batch2, seq2, width2), dtype=jnp.float32)
    params2 = init_mlp_params(k_p2, width2, init_scale, jnp.float32)
    prep2 = prepare_mlp_params(*params2, tile_h=256)

    out2 = jax.block_until_ready(mlp_pallas(x2, prep2, tile_m=128))
    out2_ref = mlp_reference(x2, *params2)
    assert out2.shape == (batch2, seq2, width2)
    assert bool(jnp.allclose(out2, out2_ref, atol=2e-4, rtol=1e-3)), "test2 mismatch"

    print("KERNEL_OK")
</pallas_src>

<mosaic_0001>
module attributes {stable_mosaic.version = 11 : i64} {
  func.func @kernel(%arg0: i32, %arg1: i32, %arg2: memref<16x256xbf16, #tpu.memory_space<vmem>>, %arg3: memref<256x256xbf16, #tpu.memory_space<vmem>>, %arg4: memref<1x256xf32, #tpu.memory_space<vmem>>, %arg5: memref<256x256xbf16, #tpu.memory_space<vmem>>, %arg6: memref<1x256xf32, #tpu.memory_space<vmem>>, %arg7: memref<16x256xf32, #tpu.memory_space<vmem>>, %arg8: memref<16x256xf32, #tpu.memory_space<vmem>>) attributes {dimension_semantics = [#tpu.dimension_semantics<parallel>, #tpu.dimension_semantics<arbitrary>], iteration_bounds = array<i64: 1, 1>, scalar_prefetch = 0 : i64, scratch_operands = 1 : i64, tpu.core_type = #tpu.core_type<tc>, window_params = [{transform_indices = @transform_0, window_bounds = array<i64: 16, 256>}, {transform_indices = @transform_1, window_bounds = array<i64: 256, 256>}, {transform_indices = @transform_2, window_bounds = array<i64: 1, 256>}, {transform_indices = @transform_3, window_bounds = array<i64: 256, 256>}, {pipeline_mode = #tpu.pipeline_mode<synchronous>, transform_indices = @transform_4, window_bounds = array<i64: 1, 256>}, {transform_indices = @transform_5, window_bounds = array<i64: 16, 256>}]} {
    %c0_i32 = arith.constant 0 : i32
    %0 = arith.cmpi eq, %arg1, %c0_i32 : i32
    %1 = arith.extui %0 : i1 to i32
    %c0_i32_0 = arith.constant 0 : i32
    %2 = arith.cmpi ne, %1, %c0_i32_0 : i32
    scf.if %2 {
      %cst_18 = arith.constant 0.000000e+00 : f32
      %26 = vector.broadcast %cst_18 : f32 to vector<16x256xf32>
      %c0_19 = arith.constant 0 : index
      %c0_20 = arith.constant 0 : index
      %27 = vector.load %arg8[%c0_19, %c0_20] : memref<16x256xf32, #tpu.memory_space<vmem>>, vector<16x256xf32>
      tpu.vector_store %arg8[%c0_19, %c0_20], %26 {strides = array<i32>} : memref<16x256xf32, #tpu.memory_space<vmem>>, vector<16x256xf32>,
    } else {
    }
    %c0 = arith.constant 0 : index
    %c0_1 = arith.constant 0 : index
    %3 = vector.load %arg2[%c0, %c0_1] : memref<16x256xbf16, #tpu.memory_space<vmem>>, vector<16x256xbf16>
    %c0_2 = arith.constant 0 : index
    %c0_3 = arith.constant 0 : index
    %4 = vector.load %arg3[%c0_2, %c0_3] : memref<256x256xbf16, #tpu.memory_space<vmem>>, vector<256x256xbf16>
    %cst = arith.constant dense<0.000000e+00> : vector<16x256xf32>
    %5 = tpu.matmul %3, %4, %cst {dimension_numbers = #tpu.dot_dimension_numbers<[1], [0], [0], [1], [0, 0, 1, 1], [], []>} : vector<16x256xbf16>, vector<256x256xbf16>, vector<16x256xf32> -> vector<16x256xf32>
    %c0_4 = arith.constant 0 : index
    %c0_5 = arith.constant 0 : index
    %6 = vector.load %arg4[%c0_4, %c0_5] : memref<1x256xf32, #tpu.memory_space<vmem>>, vector<1x256xf32>
    %7 = vector.broadcast %6 : vector<1x256xf32> to vector<16x256xf32>
    %8 = arith.addf %5, %7 : vector<16x256xf32>
    %cst_6 = arith.constant 5.000000e-01 : f32
    %9 = vector.broadcast %cst_6 : f32 to vector<16x256xf32>
    %10 = arith.mulf %9, %8 : vector<16x256xf32>
    %cst_7 = arith.constant 0.707106769 : f32
    %11 = vector.broadcast %cst_7 : f32 to vector<16x256xf32>
    %12 = arith.mulf %8, %11 : vector<16x256xf32>
    %13 = math.erf %12 : vector<16x256xf32>
    %cst_8 = arith.constant 1.000000e+00 : f32
    %14 = vector.broadcast %cst_8 : f32 to vector<16x256xf32>
    %15 = arith.addf %14, %13 : vector<16x256xf32>
    %16 = arith.mulf %10, %15 : vector<16x256xf32>
    %c0_9 = arith.constant 0 : index
    %c0_10 = arith.constant 0 : index
    %17 = vector.load %arg8[%c0_9, %c0_10] : memref<16x256xf32, #tpu.memory_space<vmem>>, vector<16x256xf32>
    %18 = arith.truncf %16 : vector<16x256xf32> to vector<16x256xbf16>
    %c0_11 = arith.constant 0 : index
    %c0_12 = arith.constant 0 : index
    %19 = vector.load %arg5[%c0_11, %c0_12] : memref<256x256xbf16, #tpu.memory_space<vmem>>, vector<256x256xbf16>
    %cst_13 = arith.constant dense<0.000000e+00> : vector<16x256xf32>
    %20 = tpu.matmul %18, %19, %cst_13 {dimension_numbers = #tpu.dot_dimension_numbers<[1], [0], [0], [1], [0, 0, 1, 1], [], []>} : vector<16x256xbf16>, vector<256x256xbf16>, vector<16x256xf32> -> vector<16x256xf32>
    %21 = arith.addf %17, %20 : vector<16x256xf32>
    %c0_14 = arith.constant 0 : index
    %c0_15 = arith.constant 0 : index
    %22 = vector.load %arg8[%c0_14, %c0_15] : memref<16x256xf32, #tpu.memory_space<vmem>>, vector<16x256xf32>
    tpu.vector_store %arg8[%c0_14, %c0_15], %21 {strides = array<i32>} : memref<16x256xf32, #tpu.memory_space<vmem>>, vector<16x256xf32>,
    %c0_i32_16 = arith.constant 0 : i32
    %23 = arith.cmpi eq, %arg1, %c0_i32_16 : i32
    %24 = arith.extui %23 : i1 to i32
    %c0_i32_17 = arith.constant 0 : i32
    %25 = arith.cmpi ne, %24, %c0_i32_17 : i32
    scf.if %25 {
      %c0_18 = arith.constant 0 : index
      %c0_19 = arith.constant 0 : index
      %26 = vector.load %arg8[%c0_18, %c0_19] : memref<16x256xf32, #tpu.memory_space<vmem>>, vector<16x256xf32>
      %c0_20 = arith.constant 0 : index
      %c0_21 = arith.constant 0 : index
      %27 = vector.load %arg6[%c0_20, %c0_21] : memref<1x256xf32, #tpu.memory_space<vmem>>, vector<1x256xf32>
      %28 = vector.broadcast %27 : vector<1x256xf32> to vector<16x256xf32>
      %29 = arith.addf %26, %28 : vector<16x256xf32>
      %c0_22 = arith.constant 0 : index
      %c0_23 = arith.constant 0 : index
      %30 = vector.load %arg7[%c0_22, %c0_23] : memref<16x256xf32, #tpu.memory_space<vmem>>, vector<16x256xf32>
      tpu.vector_store %arg7[%c0_22, %c0_23], %29 {strides = array<i32>} : memref<16x256xf32, #tpu.memory_space<vmem>>, vector<16x256xf32>,
    } else {
    }
    return
  }
  func.func @transform_0(%arg0: i32, %arg1: i32) -> (i32, i32) {
    %c0_i32 = arith.constant 0 : i32
    %c0_i32_0 = arith.constant 0 : i32
    return %arg0, %c0_i32 : i32, i32
  }
  func.func @transform_1(%arg0: i32, %arg1: i32) -> (i32, i32) {
    %c0_i32 = arith.constant 0 : i32
    %c0_i32_0 = arith.constant 0 : i32
    return %c0_i32, %arg1 : i32, i32
  }
  func.func @transform_2(%arg0: i32, %arg1: i32) -> (i32, i32) {
    %c0_i32 = arith.constant 0 : i32
    %c0_i32_0 = arith.constant 0 : i32
    return %c0_i32, %arg1 : i32, i32
  }
  func.func @transform_3(%arg0: i32, %arg1: i32) -> (i32, i32) {
    %c0_i32 = arith.constant 0 : i32
    %c0_i32_0 = arith.constant 0 : i32
    return %arg1, %c0_i32 : i32, i32
  }
  func.func @transform_4(%arg0: i32, %arg1: i32) -> (i32, i32) {
    %c0_i32 = arith.constant 0 : i32
    %c0_i32_0 = arith.constant 0 : i32
    %c0_i32_1 = arith.constant 0 : i32
    return %c0_i32, %c0_i32_0 : i32, i32
  }
  func.func @transform_5(%arg0: i32, %arg1: i32) -> (i32, i32) {
    %c0_i32 = arith.constant 0 : i32
    %c0_i32_0 = arith.constant 0 : i32
    return %arg0, %c0_i32 : i32, i32
  }
}

</mosaic_0001>

<llo_original>
// kernel: tpu_custom_call.1
$region0: #{tpu_custom_call.1}
  #allocation0 [shape = 'u32[]', space=smem, size = 0x4, offset = 0x4, fixed_abs, tag = 'smem constant byte address 0x4 - core index']
  #allocation1 [shape = 'u32[144,128]{1,0:T(1,128)}', space=vmem, size = 0x12000, scoped, tag = 'internal scratch']
  #allocation2 [shape = 'f32[16,256]{1,0:T(8,128)}', space=vmem, size = 0x4000, scoped, tag = 'scratch operand']
  %s0 = inlined_call_operand.hbm [shape: bf16[16,256], index: 0, kind: input, shape index: {}]
  %s1 = inlined_call_operand.hbm [shape: bf16[256,256], index: 1, kind: input, shape index: {}]
  %s2 = inlined_call_operand.vmem [shape: f32[1,256], index: 2, kind: input, shape index: {}]
  %s3 = inlined_call_operand.hbm [shape: bf16[256,256], index: 3, kind: input, shape index: {}]
  %s4 = inlined_call_operand.vmem [shape: f32[1,256], index: 4, kind: input, shape index: {}]
  %s5 = inlined_call_operand.hbm [shape: f32[16,256], index: 5, kind: output, shape index: {}]
  %s6 = sld [smem:[#allocation0]]
  $region50: #{tpu_custom_call.1} parent=0
    _
  %s8 = ssub.s32 1, %s6
  %s9 = scalar_select 0, %s8, %s6
  $region1: #{tpu_custom_call.1} parent=0
    #allocation3 [shape = 'u8[8192]{0}', space=vmem, size = 0x2000, scoped, tag = 'input window, operand 0, single buffered']
    #allocation4 [shape = 's32[1]{0}', space=sflag, size = 0x4, scoped, tag = 'scoped memory for tpu_custom_call.1']
    #allocation5 [shape = 's32[1]{0}', space=sflag, size = 0x4, scoped, tag = 'scoped memory for tpu_custom_call.1']
    #allocation6 [shape = 'u8[131072]{0}', space=vmem, size = 0x20000, scoped, tag = 'input window, operand 1, single buffered']
    #allocation7 [shape = 's32[1]{0}', space=sflag, size = 0x4, scoped, tag = 'scoped memory for tpu_custom_call.1']
    #allocation8 [shape = 'u8[131072]{0}', space=vmem, size = 0x20000, scoped, tag = 'input window, operand 3, single buffered']
    #allocation9 [shape = 'u8[16384]{0}', space=vmem, size = 0x4000, scoped, tag = 'output window, operand 0, single buffered']
    %10 = vsyncpa [#allocation4], 0
    %11 = vsyncpa [#allocation7], 0
    %12 = vsyncpa [#allocation5], 0
    // Predicated region
    $region2: #{tpu_custom_call.1} parent=1 // pred_check
      _
    $region3: #{tpu_custom_call.1} parent=1 // pred_check_branch
      %14 = sbr.rel (0) target = $region5
    $region4: #{tpu_custom_call.1} parent=1 // pred_region
      %s16 = ssub.s32 256, 256
      %17 = vsyncadd [#allocation4], %s16
      %s18 = sshll.u32 [#allocation3], 4
      %s19 = int_to_ptr.vmem [resolvable:$true] %s18
      %24 = dma.hbm_to_vmem [thread:$0]  %s0, 256, %s19, [#allocation4], 128, 128, 8
    $region5: #{tpu_custom_call.1} parent=1 // pred_fallthru
      _
    // Predicated region
    $region6: #{tpu_custom_call.1} parent=1 // pred_check
      _
    $region7: #{tpu_custom_call.1} parent=1 // pred_check_branch
      %26 = sbr.rel (0) target = $region9
    $region8: #{tpu_custom_call.1} parent=1 // pred_region
      %s28 = ssub.s32 4096, 4096
      %29 = vsyncadd [#allocation7], %s28
      %s30 = sshll.u32 [#allocation6], 4
      %s31 = int_to_ptr.vmem [resolvable:$true] %s30
      %36 = dma.hbm_to_vmem [thread:$0]  %s1, 4096, %s31, [#allocation7], 128, 128, 8
    $region9: #{tpu_custom_call.1} parent=1 // pred_fallthru
      _
    // Predicated region
    $region10: #{tpu_custom_call.1} parent=1 // pred_check
      _
    $region11: #{tpu_custom_call.1} parent=1 // pred_check_branch
      %38 = sbr.rel (0) target = $region13
    $region12: #{tpu_custom_call.1} parent=1 // pred_region
      _
    $region13: #{tpu_custom_call.1} parent=1 // pred_fallthru
      _
    // Predicated region
    $region14: #{tpu_custom_call.1} parent=1 // pred_check
      _
    $region15: #{tpu_custom_call.1} parent=1 // pred_check_branch
      %40 = sbr.rel (0) target = $region17
    $region16: #{tpu_custom_call.1} parent=1 // pred_region
      %s42 = ssub.s32 4096, 4096
      %43 = vsyncadd [#allocation7], %s42
      %s44 = sshll.u32 [#allocation8], 4
      %s45 = int_to_ptr.vmem [resolvable:$true] %s44
      %50 = dma.hbm_to_vmem [thread:$0]  %s3, 4096, %s45, [#allocation7], 128, 128, 8
    $region17: #{tpu_custom_call.1} parent=1 // pred_fallthru
      _
    // Predicated region
    $region18: #{tpu_custom_call.1} parent=1 // pred_check
      _
    $region19: #{tpu_custom_call.1} parent=1 // pred_check_branch
      %52 = sbr.rel (0) target = $region21
    $region20: #{tpu_custom_call.1} parent=1 // pred_region
      _
    $region21: #{tpu_custom_call.1} parent=1 // pred_fallthru
      _
    // Predicated region
    $region22: #{tpu_custom_call.1} parent=1 // pred_check
      _
    $region23: #{tpu_custom_call.1} parent=1 // pred_check_branch
      %54 = sbr.rel (0) target = $region25
    $region24: #{tpu_custom_call.1} parent=1 // pred_region
      %55 = dma.done [#allocation4], 256
    $region25: #{tpu_custom_call.1} parent=1 // pred_fallthru
      _
    // Predicated region
    $region26: #{tpu_custom_call.1} parent=1 // pred_check
      _
    $region27: #{tpu_custom_call.1} parent=1 // pred_check_branch
      %57 = sbr.rel (0) target = $region29
    $region28: #{tpu_custom_call.1} parent=1 // pred_region
      %58 = dma.done [#allocation7], 4096
    $region29: #{tpu_custom_call.1} parent=1 // pred_fallthru
      _
    // Predicated region
    $region30: #{tpu_custom_call.1} parent=1 // pred_check
      _
    $region31: #{tpu_custom_call.1} parent=1 // pred_check_branch
      %60 = sbr.rel (0) target = $region33
    $region32: #{tpu_custom_call.1} parent=1 // pred_region
      %61 = dma.done [#allocation7], 4096
    $region33: #{tpu_custom_call.1} parent=1 // pred_fallthru
      _
    %p62 = scmp.eq.s32.totalorder 0, 0
    // Predicated region
    $region34: #{tpu_custom_call.1} parent=1 // pred_check
      %p63 = pneg %p62
    $region35: #{tpu_custom_call.1} parent=1 // pred_check_branch
      %65 = sbr.rel (%p63) target = $region37
    $region36: #{tpu_custom_call.1} parent=1 // pred_region
      %66 = vst [vmem:[#allocation2] sm:$0xff] 0.0
      %67 = vst [vmem:[#allocation2 + $0x8] sm:$0xff] 0.0
      %68 = vst [vmem:[#allocation2 + $0x10] sm:$0xff] 0.0
      %69 = vst [vmem:[#allocation2 + $0x18] sm:$0xff] 0.0
    $region37: #{tpu_custom_call.1} parent=1 // pred_fallthru
      _
    %v70 = vld [vmem:[#allocation3] sm:$0xff]
    %v71 = vld [vmem:[#allocation3 + $0x8] sm:$0xff]
    %v72 = vld [vmem:[#allocation6] sm:$0xff]
    %v73 = vld [vmem:[#allocation6 + $0x8] sm:$0xff]
    %v74 = vld [vmem:[#allocation6 + $0x10] sm:$0xff]
    %v75 = vld [vmem:[#allocation6 + $0x18] sm:$0xff]
    %v76 = vld [vmem:[#allocation6 + $0x20] sm:$0xff]
    %v77 = vld [vmem:[#allocation6 + $0x28] sm:$0xff]
    %v78 = vld [vmem:[#allocation6 + $0x30] sm:$0xff]
    %v79 = vld [vmem:[#allocation6 + $0x38] sm:$0xff]
    %v80 = vld [vmem:[#allocation6 + $0x40] sm:$0xff]
    %v81 = vld [vmem:[#allocation6 + $0x48] sm:$0xff]
    %v82 = vld [vmem:[#allocation6 + $0x50] sm:$0xff]
    %v83 = vld [vmem:[#allocation6 + $0x58] sm:$0xff]
    %v84 = vld [vmem:[#allocation6 + $0x60] sm:$0xff]
    %v85 = vld [vmem:[#allocation6 + $0x68] sm:$0xff]
    %v86 = vld [vmem:[#allocation6 + $0x70] sm:$0xff]
    %v87 = vld [vmem:[#allocation6 + $0x78] sm:$0xff]
    %v88 = vld [vmem:[#allocation6 + $0x80] sm:$0xff]
    %v89 = vld [vmem:[#allocation6 + $0x88] sm:$0xff]
    %v90 = vld [vmem:[#allocation6 + $0x90] sm:$0xff]
    %v91 = vld [vmem:[#allocation6 + $0x98] sm:$0xff]
    %v92 = vld [vmem:[#allocation6 + $0xa0] sm:$0xff]
    %v93 = vld [vmem:[#allocation6 + $0xa8] sm:$0xff]
    %v94 = vld [vmem:[#allocation6 + $0xb0] sm:$0xff]
    %v95 = vld [vmem:[#allocation6 + $0xb8] sm:$0xff]
    %v96 = vld [vmem:[#allocation6 + $0xc0] sm:$0xff]
    %v97 = vld [vmem:[#allocation6 + $0xc8] sm:$0xff]
    %v98 = vld [vmem:[#allocation6 + $0xd0] sm:$0xff]
    %v99 = vld [vmem:[#allocation6 + $0xd8] sm:$0xff]
    %v100 = vld [vmem:[#allocation6 + $0xe0] sm:$0xff]
    %v101 = vld [vmem:[#allocation6 + $0xe8] sm:$0xff]
    %v102 = vld [vmem:[#allocation6 + $0xf0] sm:$0xff]
    %v103 = vld [vmem:[#allocation6 + $0xf8] sm:$0xff]
    %v104 = vld [vmem:[%s2] sm:$0x3]
    %v106 = vlaneseq
    %v107 = vshrl.u32 %v106, 7
    %v108 = vsub.s32 0, %v107
    %v109 = vrot.slane %v104, %v108
    %v110 = vlaneseq
    %v111 = vshrl.u32 %v110, 7
    %v112 = vsub.s32 1, %v111
    %v113 = vrot.slane %v104, %v112
    %v118 = vunpack.c.l.b16 %v70
    %v119 = vunpack.c.h.b16 %v70
    %v120 = vunpack.c.l.b16 %v71
    %v121 = vunpack.c.h.b16 %v71
    %v122 = vpack.c.b16 %v120, %v118
    %v123 = vpack.c.b16 %v121, %v119
    %v158 = vunpack.c.l.b16 %v72
    %v159 = vunpack.c.h.b16 %v72
    %v160 = vunpack.c.l.b16 %v73
    %v161 = vunpack.c.h.b16 %v73
    %v162 = vunpack.c.l.b16 %v74
    %v163 = vunpack.c.h.b16 %v74
    %v164 = vunpack.c.l.b16 %v75
    %v165 = vunpack.c.h.b16 %v75
    %v166 = vunpack.c.l.b16 %v76
    %v167 = vunpack.c.h.b16 %v76
    %v168 = vunpack.c.l.b16 %v77
    %v169 = vunpack.c.h.b16 %v77
    %v170 = vunpack.c.l.b16 %v78
    %v171 = vunpack.c.h.b16 %v78
    %v172 = vunpack.c.l.b16 %v79
    %v173 = vunpack.c.h.b16 %v79
    %v174 = vunpack.c.l.b16 %v80
    %v175 = vunpack.c.h.b16 %v80
    %v176 = vunpack.c.l.b16 %v81
    %v177 = vunpack.c.h.b16 %v81
    %v178 = vunpack.c.l.b16 %v82
    %v179 = vunpack.c.h.b16 %v82
    %v180 = vunpack.c.l.b16 %v83
    %v181 = vunpack.c.h.b16 %v83
    %v182 = vunpack.c.l.b16 %v84
    %v183 = vunpack.c.h.b16 %v84
    %v184 = vunpack.c.l.b16 %v85
    %v185 = vunpack.c.h.b16 %v85
    %v186 = vunpack.c.l.b16 %v86
    %v187 = vunpack.c.h.b16 %v86
    %v188 = vunpack.c.l.b16 %v87
    %v189 = vunpack.c.h.b16 %v87
    %v190 = vunpack.c.l.b16 %v88
    %v191 = vunpack.c.h.b16 %v88
    %v192 = vunpack.c.l.b16 %v89
    %v193 = vunpack.c.h.b16 %v89
    %v194 = vunpack.c.l.b16 %v90
    %v195 = vunpack.c.h.b16 %v90
    %v196 = vunpack.c.l.b16 %v91
    %v197 = vunpack.c.h.b16 %v91
    %v198 = vunpack.c.l.b16 %v92
    %v199 = vunpack.c.h.b16 %v92
    %v200 = vunpack.c.l.b16 %v93
    %v201 = vunpack.c.h.b16 %v93
    %v202 = vunpack.c.l.b16 %v94
    %v203 = vunpack.c.h.b16 %v94
    %v204 = vunpack.c.l.b16 %v95
    %v205 = vunpack.c.h.b16 %v95
    %v206 = vunpack.c.l.b16 %v96
    %v207 = vunpack.c.h.b16 %v96
    %v208 = vunpack.c.l.b16 %v97
    %v209 = vunpack.c.h.b16 %v97
    %v210 = vunpack.c.l.b16 %v98
    %v211 = vunpack.c.h.b16 %v98
    %v212 = vunpack.c.l.b16 %v99
    %v213 = vunpack.c.h.b16 %v99
    %v214 = vunpack.c.l.b16 %v100
    %v215 = vunpack.c.h.b16 %v100
    %v216 = vunpack.c.l.b16 %v101
    %v217 = vunpack.c.h.b16 %v101
    %v218 = vunpack.c.l.b16 %v102
    %v219 = vunpack.c.h.b16 %v102
    %v220 = vunpack.c.l.b16 %v103
    %v221 = vunpack.c.h.b16 %v103
    %v222 = vpack.c.b16 %v160, %v158
    %v223 = vpack.c.b16 %v161, %v159
    %v224 = vpack.c.b16 %v164, %v162
    %v225 = vpack.c.b16 %v165, %v163
    %v226 = vpack.c.b16 %v168, %v166
    %v227 = vpack.c.b16 %v169, %v167
    %v228 = vpack.c.b16 %v172, %v170
    %v229 = vpack.c.b16 %v173, %v171
    %v230 = vpack.c.b16 %v176, %v174
    %v231 = vpack.c.b16 %v177, %v175
    %v232 = vpack.c.b16 %v180, %v178
    %v233 = vpack.c.b16 %v181, %v179
    %v234 = vpack.c.b16 %v184, %v182
    %v235 = vpack.c.b16 %v185, %v183
    %v236 = vpack.c.b16 %v188, %v186
    %v237 = vpack.c.b16 %v189, %v187
    %v238 = vpack.c.b16 %v192, %v190
    %v239 = vpack.c.b16 %v193, %v191
    %v240 = vpack.c.b16 %v196, %v194
    %v241 = vpack.c.b16 %v197, %v195
    %v242 = vpack.c.b16 %v200, %v198
    %v243 = vpack.c.b16 %v201, %v199
    %v244 = vpack.c.b16 %v204, %v202
    %v245 = vpack.c.b16 %v205, %v203
    %v246 = vpack.c.b16 %v208, %v206
    %v247 = vpack.c.b16 %v209, %v207
    %v248 = vpack.c.b16 %v212, %v210
    %v249 = vpack.c.b16 %v213, %v211
    %v250 = vpack.c.b16 %v216, %v214
    %v251 = vpack.c.b16 %v217, %v215
    %v252 = vpack.c.b16 %v220, %v218
    %v253 = vpack.c.b16 %v221, %v219
    %286 = vmatprep.subr.bf16.mxu0 %v223
    %287 = vmatpush1.bf16.msra.mxu0 %v222
    %288 = vmatprep.subr.bf16.mxu0 %v225
    %289 = vmatpush1.bf16.msra.mxu0 %v224
    %290 = vmatprep.subr.bf16.mxu0 %v227
    %291 = vmatpush1.bf16.msra.mxu0 %v226
    %292 = vmatprep.subr.bf16.mxu0 %v229
    %293 = vmatpush1.bf16.msra.mxu0 %v228
    %294 = vmatprep.subr.bf16.mxu0 %v231
    %295 = vmatpush1.bf16.msra.mxu0 %v230
    %296 = vmatprep.subr.bf16.mxu0 %v233
    %297 = vmatpush1.bf16.msra.mxu0 %v232
    %298 = vmatprep.subr.bf16.mxu0 %v235
    %299 = vmatpush1.bf16.msra.mxu0 %v234
    %300 = vmatprep.subr.bf16.mxu0 %v237
    %301 = vmatpush1.bf16.msra.mxu0 %v236
    %302 = vmatprep.subr.bf16.mxu0 %v239
    %303 = vmatpush1.bf16.msra.mxu0 %v238
    %304 = vmatprep.subr.bf16.mxu0 %v241
    %305 = vmatpush1.bf16.msra.mxu0 %v240
    %306 = vmatprep.subr.bf16.mxu0 %v243
    %307 = vmatpush1.bf16.msra.mxu0 %v242
    %308 = vmatprep.subr.bf16.mxu0 %v245
    %309 = vmatpush1.bf16.msra.mxu0 %v244
    %310 = vmatprep.subr.bf16.mxu0 %v247
    %311 = vmatpush1.bf16.msra.mxu0 %v246
    %312 = vmatprep.subr.bf16.mxu0 %v249
    %313 = vmatpush1.bf16.msra.mxu0 %v248
    %314 = vmatprep.subr.bf16.mxu0 %v251
    %315 = vmatpush1.bf16.msra.mxu0 %v250
    %316 = vmatprep.subr.bf16.mxu0 %v253
    %317 = vmatpush1.bf16.msra.mxu0 %v252
    %318 = vmatprep.mubr.bf16.mxu0 %v123
    %319 = vmatmul.mubr.bf16.gmra.mrb[0].mxu0 %v122
    %v320 = vpop.f32.mrb[0].mxu0
    %v321 = vadd.f32 %v109, %v320
    %v322 = vpop.f32.mrb[0].mxu0
    %v323 = vadd.f32 %v113, %v322
    %v324 = vpop.f32.mrb[0].mxu0
    %v325 = vadd.f32 %v109, %v324
    %v326 = vpop.f32.mrb[0].mxu0
    %v327 = vadd.f32 %v113, %v326
    %328 = vdwg.mxu0
    %v329 = vmul.f32 %v321, 0.5
    %v330 = vmul.f32 %v323, 0.5
    %v331 = vmul.f32 %v325, 0.5
    %v332 = vmul.f32 %v327, 0.5
    %v333 = vmul.f32 %v321, 0.70710677
    %v334 = vmul.f32 %v323, 0.70710677
    %v335 = vmul.f32 %v325, 0.70710677
    %v336 = vmul.f32 %v327, 0.70710677
    %v337 = verf.f32.pop %v333
    %v338 = verf.f32.pop %v334
    %v339 = verf.f32.pop %v335
    %v340 = verf.f32.pop %v336
    %v341 = vadd.f32 %v337, 1.0
    %v342 = vadd.f32 %v338, 1.0
    %v343 = vadd.f32 %v339, 1.0
    %v344 = vadd.f32 %v340, 1.0
    %v345 = vmul.f32 %v329, %v341
    %v346 = vmul.f32 %v330, %v342
    %v347 = vmul.f32 %v331, %v343
    %v348 = vmul.f32 %v332, %v344
    %v349 = vld [vmem:[#allocation2] sm:$0xff]
    %v350 = vld [vmem:[#allocation2 + $0x8] sm:$0xff]
    %v351 = vld [vmem:[#allocation2 + $0x10] sm:$0xff]
    %v352 = vld [vmem:[#allocation2 + $0x18] sm:$0xff]
    %v353 = vpack.c.bf16 %v347, %v345
    %v354 = vpack.c.bf16 %v348, %v346
    %v355 = vld [vmem:[#allocation8] sm:$0xff]
    %v356 = vld [vmem:[#allocation8 + $0x8] sm:$0xff]
    %v357 = vld [vmem:[#allocation8 + $0x10] sm:$0xff]
    %v358 = vld [vmem:[#allocation8 + $0x18] sm:$0xff]
    %v359 = vld [vmem:[#allocation8 + $0x20] sm:$0xff]
    %v360 = vld [vmem:[#allocation8 + $0x28] sm:$0xff]
    %v361 = vld [vmem:[#allocation8 + $0x30] sm:$0xff]
    %v362 = vld [vmem:[#allocation8 + $0x38] sm:$0xff]
    %v363 = vld [vmem:[#allocation8 + $0x40] sm:$0xff]
    %v364 = vld [vmem:[#allocation8 + $0x48] sm:$0xff]
    %v365 = vld [vmem:[#allocation8 + $0x50] sm:$0xff]
    %v366 = vld [vmem:[#allocation8 + $0x58] sm:$0xff]
    %v367 = vld [vmem:[#allocation8 + $0x60] sm:$0xff]
    %v368 = vld [vmem:[#allocation8 + $0x68] sm:$0xff]
    %v369 = vld [vmem:[#allocation8 + $0x70] sm:$0xff]
    %v370 = vld [vmem:[#allocation8 + $0x78] sm:$0xff]
    %v371 = vld [vmem:[#allocation8 + $0x80] sm:$0xff]
    %v372 = vld [vmem:[#allocation8 + $0x88] sm:$0xff]
    %v373 = vld [vmem:[#allocation8 + $0x90] sm:$0xff]
    %v374 = vld [vmem:[#allocation8 + $0x98] sm:$0xff]
    %v375 = vld [vmem:[#allocation8 + $0xa0] sm:$0xff]
    %v376 = vld [vmem:[#allocation8 + $0xa8] sm:$0xff]
    %v377 = vld [vmem:[#allocation8 + $0xb0] sm:$0xff]
    %v378 = vld [vmem:[#allocation8 + $0xb8] sm:$0xff]
    %v379 = vld [vmem:[#allocation8 + $0xc0] sm:$0xff]
    %v380 = vld [vmem:[#allocation8 + $0xc8] sm:$0xff]
    %v381 = vld [vmem:[#allocation8 + $0xd0] sm:$0xff]
    %v382 = vld [vmem:[#allocation8 + $0xd8] sm:$0xff]
    %v383 = vld [vmem:[#allocation8 + $0xe0] sm:$0xff]
    %v384 = vld [vmem:[#allocation8 + $0xe8] sm:$0xff]
    %v385 = vld [vmem:[#allocation8 + $0xf0] sm:$0xff]
    %v386 = vld [vmem:[#allocation8 + $0xf8] sm:$0xff]
    %v419 = vunpack.c.l.b16 %v355
    %v420 = vunpack.c.h.b16 %v355
    %v421 = vunpack.c.l.b16 %v356
    %v422 = vunpack.c.h.b16 %v356
    %v423 = vunpack.c.l.b16 %v357
    %v424 = vunpack.c.h.b16 %v357
    %v425 = vunpack.c.l.b16 %v358
    %v426 = vunpack.c.h.b16 %v358
    %v427 = vunpack.c.l.b16 %v359
    %v428 = vunpack.c.h.b16 %v359
    %v429 = vunpack.c.l.b16 %v360
    %v430 = vunpack.c.h.b16 %v360
    %v431 = vunpack.c.l.b16 %v361
    %v432 = vunpack.c.h.b16 %v361
    %v433 = vunpack.c.l.b16 %v362
    %v434 = vunpack.c.h.b16 %v362
    %v435 = vunpack.c.l.b16 %v363
    %v436 = vunpack.c.h.b16 %v363
    %v437 = vunpack.c.l.b16 %v364
    %v438 = vunpack.c.h.b16 %v364
    %v439 = vunpack.c.l.b16 %v365
    %v440 = vunpack.c.h.b16 %v365
    %v441 = vunpack.c.l.b16 %v366
    %v442 = vunpack.c.h.b16 %v366
    %v443 = vunpack.c.l.b16 %v367
    %v444 = vunpack.c.h.b16 %v367
    %v445 = vunpack.c.l.b16 %v368
    %v446 = vunpack.c.h.b16 %v368
    %v447 = vunpack.c.l.b16 %v369
    %v448 = vunpack.c.h.b16 %v369
    %v449 = vunpack.c.l.b16 %v370
    %v450 = vunpack.c.h.b16 %v370
    %v451 = vunpack.c.l.b16 %v371
    %v452 = vunpack.c.h.b16 %v371
    %v453 = vunpack.c.l.b16 %v372
    %v454 = vunpack.c.h.b16 %v372
    %v455 = vunpack.c.l.b16 %v373
    %v456 = vunpack.c.h.b16 %v373
    %v457 = vunpack.c.l.b16 %v374
    %v458 = vunpack.c.h.b16 %v374
    %v459 = vunpack.c.l.b16 %v375
    %v460 = vunpack.c.h.b16 %v375
    %v461 = vunpack.c.l.b16 %v376
    %v462 = vunpack.c.h.b16 %v376
    %v463 = vunpack.c.l.b16 %v377
    %v464 = vunpack.c.h.b16 %v377
    %v465 = vunpack.c.l.b16 %v378
    %v466 = vunpack.c.h.b16 %v378
    %v467 = vunpack.c.l.b16 %v379
    %v468 = vunpack.c.h.b16 %v379
    %v469 = vunpack.c.l.b16 %v380
    %v470 = vunpack.c.h.b16 %v380
    %v471 = vunpack.c.l.b16 %v381
    %v472 = vunpack.c.h.b16 %v381
    %v473 = vunpack.c.l.b16 %v382
    %v474 = vunpack.c.h.b16 %v382
    %v475 = vunpack.c.l.b16 %v383
    %v476 = vunpack.c.h.b16 %v383
    %v477 = vunpack.c.l.b16 %v384
    %v478 = vunpack.c.h.b16 %v384
    %v479 = vunpack.c.l.b16 %v385
    %v480 = vunpack.c.h.b16 %v385
    %v481 = vunpack.c.l.b16 %v386
    %v482 = vunpack.c.h.b16 %v386
    %v483 = vpack.c.b16 %v421, %v419
    %v484 = vpack.c.b16 %v422, %v420
    %v485 = vpack.c.b16 %v425, %v423
    %v486 = vpack.c.b16 %v426, %v424
    %v487 = vpack.c.b16 %v429, %v427
    %v488 = vpack.c.b16 %v430, %v428
    %v489 = vpack.c.b16 %v433, %v431
    %v490 = vpack.c.b16 %v434, %v432
    %v491 = vpack.c.b16 %v437, %v435
    %v492 = vpack.c.b16 %v438, %v436
    %v493 = vpack.c.b16 %v441, %v439
    %v494 = vpack.c.b16 %v442, %v440
    %v495 = vpack.c.b16 %v445, %v443
    %v496 = vpack.c.b16 %v446, %v444
    %v497 = vpack.c.b16 %v449, %v447
    %v498 = vpack.c.b16 %v450, %v448
    %v499 = vpack.c.b16 %v453, %v451
    %v500 = vpack.c.b16 %v454, %v452
    %v501 = vpack.c.b16 %v457, %v455
    %v502 = vpack.c.b16 %v458, %v456
    %v503 = vpack.c.b16 %v461, %v459
    %v504 = vpack.c.b16 %v462, %v460
    %v505 = vpack.c.b16 %v465, %v463
    %v506 = vpack.c.b16 %v466, %v464
    %v507 = vpack.c.b16 %v469, %v467
    %v508 = vpack.c.b16 %v470, %v468
    %v509 = vpack.c.b16 %v473, %v471
    %v510 = vpack.c.b16 %v474, %v472
    %v511 = vpack.c.b16 %v477, %v475
    %v512 = vpack.c.b16 %v478, %v476
    %v513 = vpack.c.b16 %v481, %v479
    %v514 = vpack.c.b16 %v482, %v480
    %547 = vmatprep.subr.bf16.mxu0 %v484
    %548 = vmatpush1.bf16.msra.mxu0 %v483
    %549 = vmatprep.subr.bf16.mxu0 %v486
    %550 = vmatpush1.bf16.msra.mxu0 %v485
    %551 = vmatprep.subr.bf16.mxu0 %v488
    %552 = vmatpush1.bf16.msra.mxu0 %v487
    %553 = vmatprep.subr.bf16.mxu0 %v490
    %554 = vmatpush1.bf16.msra.mxu0 %v489
    %555 = vmatprep.subr.bf16.mxu0 %v492
    %556 = vmatpush1.bf16.msra.mxu0 %v491
    %557 = vmatprep.subr.bf16.mxu0 %v494
    %558 = vmatpush1.bf16.msra.mxu0 %v493
    %559 = vmatprep.subr.bf16.mxu0 %v496
    %560 = vmatpush1.bf16.msra.mxu0 %v495
    %561 = vmatprep.subr.bf16.mxu0 %v498
    %562 = vmatpush1.bf16.msra.mxu0 %v497
    %563 = vmatprep.subr.bf16.mxu0 %v500
    %564 = vmatpush1.bf16.msra.mxu0 %v499
    %565 = vmatprep.subr.bf16.mxu0 %v502
    %566 = vmatpush1.bf16.msra.mxu0 %v501
    %567 = vmatprep.subr.bf16.mxu0 %v504
    %568 = vmatpush1.bf16.msra.mxu0 %v503
    %569 = vmatprep.subr.bf16.mxu0 %v506
    %570 = vmatpush1.bf16.msra.mxu0 %v505
    %571 = vmatprep.subr.bf16.mxu0 %v508
    %572 = vmatpush1.bf16.msra.mxu0 %v507
    %573 = vmatprep.subr.bf16.mxu0 %v510
    %574 = vmatpush1.bf16.msra.mxu0 %v509
    %575 = vmatprep.subr.bf16.mxu0 %v512
    %576 = vmatpush1.bf16.msra.mxu0 %v511
    %577 = vmatprep.subr.bf16.mxu0 %v514
    %578 = vmatpush1.bf16.msra.mxu0 %v513
    %579 = vmatprep.mubr.bf16.mxu0 %v354
    %580 = vmatmul.mubr.bf16.gmra.mrb[0].mxu0 %v353
    %v581 = vpop.f32.mrb[0].mxu0
    %v582 = vadd.f32 0.0, %v581
    %v583 = vpop.f32.mrb[0].mxu0
    %v584 = vadd.f32 0.0, %v583
    %v585 = vpop.f32.mrb[0].mxu0
    %v586 = vadd.f32 0.0, %v585
    %v587 = vpop.f32.mrb[0].mxu0
    %v588 = vadd.f32 0.0, %v587
    %589 = vdwg.mxu0
    %v590 = vadd.f32 %v349, %v582
    %v591 = vadd.f32 %v350, %v584
    %v592 = vadd.f32 %v351, %v586
    %v593 = vadd.f32 %v352, %v588
    %594 = vst [vmem:[#allocation2] sm:$0xff] %v590
    %595 = vst [vmem:[#allocation2 + $0x8] sm:$0xff] %v591
    %596 = vst [vmem:[#allocation2 + $0x10] sm:$0xff] %v592
    %597 = vst [vmem:[#allocation2 + $0x18] sm:$0xff] %v593
    // Predicated region
    $region38: #{tpu_custom_call.1} parent=1 // pred_check
      %p598 = pneg %p62
    $region39: #{tpu_custom_call.1} parent=1 // pred_check_branch
      %600 = sbr.rel (%p598) target = $region41
    $region40: #{tpu_custom_call.1} parent=1 // pred_region
      %v601 = vld [vmem:[#allocation2] sm:$0xff]
      %v602 = vld [vmem:[#allocation2 + $0x8] sm:$0xff]
      %v603 = vld [vmem:[#allocation2 + $0x10] sm:$0xff]
      %v604 = vld [vmem:[#allocation2 + $0x18] sm:$0xff]
      %v605 = vld [vmem:[%s4] sm:$0x3]
      %v607 = vlaneseq
      %v608 = vshrl.u32 %v607, 7
      %v609 = vsub.s32 0, %v608
      %v610 = vrot.slane %v605, %v609
      %v611 = vlaneseq
      %v612 = vshrl.u32 %v611, 7
      %v613 = vsub.s32 1, %v612
      %v614 = vrot.slane %v605, %v613
      %v617 = vadd.f32 %v601, %v610
      %v618 = vadd.f32 %v602, %v614
      %v619 = vadd.f32 %v603, %v610
      %v620 = vadd.f32 %v604, %v614
      %621 = vst [vmem:[#allocation9] sm:$0xff] %v617
      %622 = vst [vmem:[#allocation9 + $0x8] sm:$0xff] %v618
      %623 = vst [vmem:[#allocation9 + $0x10] sm:$0xff] %v619
      %624 = vst [vmem:[#allocation9 + $0x18] sm:$0xff] %v620
    $region41: #{tpu_custom_call.1} parent=1 // pred_fallthru
      _
    // Predicated region
    $region42: #{tpu_custom_call.1} parent=1 // pred_check
      _
    $region43: #{tpu_custom_call.1} parent=1 // pred_check_branch
      %626 = sbr.rel (0) target = $region45
    $region44: #{tpu_custom_call.1} parent=1 // pred_region
      %s628 = ssub.s32 512, 512
      %629 = vsyncadd [#allocation5], %s628
      %s630 = sshll.u32 [#allocation9], 4
      %s631 = int_to_ptr.vmem [resolvable:$true] %s630
      %636 = dma.vmem_to_hbm [thread:$0]  %s631, 512, %s5, [#allocation5], 256, 256, 16
    $region45: #{tpu_custom_call.1} parent=1 // pred_fallthru
      _
    // Predicated region
    $region46: #{tpu_custom_call.1} parent=1 // pred_check
      _
    $region47: #{tpu_custom_call.1} parent=1 // pred_check_branch
      %638 = sbr.rel (0) target = $region49
    $region48: #{tpu_custom_call.1} parent=1 // pred_region
      %639 = dma.done [#allocation5], 512
    $region49: #{tpu_custom_call.1} parent=1 // pred_fallthru
      _
    %640 = vsyncpa [#allocation4], 1
    %641 = vsyncpa [#allocation7], 1
    %642 = vsyncpa [#allocation5], 1

</llo_original>
